<compile_context>
chip_gen: v6e
topology: v6e:2x2x1
jax: 0.10.0
libtpu: 0.0.40
codegen_flags: <defaults>
</compile_context>

<pallas_src>
import math

import jax
import jax.numpy as jnp
from jax.experimental import pallas as pl
from jax.experimental.pallas import tpu as pltpu


def _vmem_capacity_bytes() -> int:
    """Physical VMEM of the current TPU generation (conservative fallback: 64 MiB)."""
    try:
        cap = int(pltpu.get_tpu_info().vmem_capacity_bytes)
        if cap >= (32 << 20):
            return cap
    except Exception:
        pass
    return 64 << 20


def _choose_fold(T: int, C: int) -> int:
    """g consecutive time steps folded into lanes so (g*C) % 128 == 0 (1 = no fold)."""
    if C % 128 == 0:
        return 1
    g = math.lcm(C, 128) // C
    if g > 1 and T % g == 0:
        return g
    return 1


def _legal_b_tiles(B: int):
    # Output block is (b_tile, Cp): b_tile must be a multiple of 8 or equal to B.
    divs = [d for d in range(1, B + 1) if B % d == 0]
    return sorted([d for d in divs if d % 8 == 0 or d == B], reverse=True)


def _choose_b_tile(B: int, T_f: int, row_bytes: int, budget: int) -> int:
    legal = _legal_b_tiles(B)
    rows_budget = max(1, budget // row_bytes)
    for d in legal:                       # largest b_tile whose full-T slab fits one buffer
        if d * T_f <= rows_budget:
            return d
    return legal[-1]                      # smallest legal b_tile; the T axis gets tiled


def _choose_t_tile(T_f: int, b_tile: int, row_bytes: int, packing: int, budget: int):
    """Returns (t_tile, needs_mask); t_tile is either T_f or a multiple of `packing`."""
    max_rows = max(1, budget // (b_tile * row_bytes))
    if T_f <= max_rows:
        return T_f, False                 # whole (folded) T axis in one block
    cap = max(packing, (min(max_rows, T_f) // packing) * packing)
    t, steps = cap, 0
    while t >= packing and steps < 4096:  # prefer an exact divisor: no tail to mask
        if T_f % t == 0:
            return t, False
        t -= packing
        steps += 1
    return cap, True                      # packing-aligned tile; tail rows masked in-kernel


def _make_kernel(T_f: int, t_tile: int, Cp: int, needs_mask: bool):
    def kernel(x_ref, o_ref):
        t = pl.program_id(2)

        @pl.when(t == 0)
        def _init():
            o_ref[...] = jnp.zeros_like(o_ref)

        x = x_ref[...].astype(jnp.float32)                 # (b_tile, t_tile, Cp)
        if needs_mask:
            # Only the globally-last T tile can be partial; zero its out-of-range rows.
            gidx = pl.program_id(0) * pl.num_programs(2) + t
            valid = T_f - gidx * t_tile
            rows = jax.lax.broadcasted_iota(jnp.int32, (t_tile, Cp), 0)
            x = jnp.where(rows < valid, x, 0.0)

        o_ref[...] += jnp.sum(x, axis=1)                   # f32 partial sums, resident over T

    return kernel


def global_avg_pool_1d(x: jax.Array) -> jax.Array:
    """PyTorch GlobalAvgPool1d: mean over axis 1 of x (B, T, C) -> (B, C)."""
    B, T, C = x.shape
    itemsize = jnp.dtype(x.dtype).itemsize
    packing = 8 * max(1, 4 // itemsize)            # sublane packing: 8 f32, 16 bf16, 32 int8
    # PyTorch's avg-pool is a floating-point mean; never truncate back to an integer dtype.
    out_dtype = x.dtype if jnp.issubdtype(x.dtype, jnp.floating) else jnp.float32

    # Lane-dense fold of time steps into lanes (free contiguous reshape).
    g = _choose_fold(T, C)
    Cp, T_f = g * C, T // g
    x_k = x.reshape(B, T_f, Cp) if g > 1 else x

    # Generation-aware budgets (v5e/v6e: 128 MiB physical VMEM; v7x: 64 MiB).
    vmem_cap = _vmem_capacity_bytes()
    budget = min(32 << 20, max(8 << 20, vmem_cap // 5))    # per pipeline buffer of the input

    row_bytes = Cp * itemsize
    b_tile = _choose_b_tile(B, T_f, row_bytes, budget)
    t_tile, needs_mask = _choose_t_tile(T_f, b_tile, row_bytes, packing, budget)

    n_b = B // b_tile
    n_t_total = pl.cdiv(T_f, t_tile) if needs_mask else T_f // t_tile
    # If there is only one B tile, split the T reduction across a leading parallel axis so
    # both v7x TensorCores get work (a harmless serial 2-step loop on single-core chips).
    n_split = 2 if (n_b == 1 and n_t_total >= 2 and n_t_total % 2 == 0) else 1
    n_t = n_t_total // n_split

    in_block_bytes = b_tile * t_tile * Cp * itemsize
    out_block_bytes = b_tile * Cp * 4
    needed = 2 * in_block_bytes + 2 * out_block_bytes
    vmem_limit = max(needed * 3 // 2 + (1 << 20), 16 << 20)
    vmem_limit = min(vmem_limit, (vmem_cap * 3) // 4)
    vmem_limit = int(max(vmem_limit, min(needed + (1 << 20), vmem_cap - (4 << 20))))

    kernel = _make_kernel(T_f, t_tile, Cp, needs_mask)

    sums = pl.pallas_call(
        kernel,
        out_shape=jax.ShapeDtypeStruct((n_split, B, Cp), jnp.float32),
        grid_spec=pltpu.PrefetchScalarGridSpec(
            num_scalar_prefetch=0,
            grid=(n_split, n_b, n_t),
            in_specs=[pl.BlockSpec((b_tile, t_tile, Cp),
                                   lambda s, b, t: (b, s * n_t + t, 0))],
            out_specs=pl.BlockSpec((None, b_tile, Cp), lambda s, b, t: (s, b, 0)),
        ),
        compiler_params=pltpu.CompilerParams(
            # split & B tiles are independent (megacore-shardable); T is the sequential reduction.
            dimension_semantics=("parallel", "parallel", "arbitrary"),
            vmem_limit_bytes=int(vmem_limit),
        ),
    )(x_k)

    # Finalize in the wrapper: collapse the split axis, undo the lane fold, scale by 1/T
    # and cast (touches only O(B * g * C) elements — negligible HBM traffic).
    tot = sums.sum(axis=0)                       # (B, Cp) f32
    if g > 1:
        tot = tot.reshape(B, g, C).sum(axis=1)   # (B, C)
    return (tot * (1.0 / float(T))).astype(out_dtype)


if __name__ == "__main__":
    key = jax.random.PRNGKey(0)

    # Case 1: matches the PyTorch module's (B, T, C) layout; exercises the lane fold (C=32 -> g=4).
    B, T, C = 2, 16, 32
    x = jax.random.normal(key, (B, T, C), dtype=jnp.float32)
    out = jax.block_until_ready(global_avg_pool_1d(x))
    ref = jnp.mean(x, axis=1)
    assert out.shape == (B, C), out.shape
    assert out.dtype == x.dtype, out.dtype
    assert jnp.allclose(out, ref, atol=1e-5, rtol=1e-5), "mismatch vs reference (case 1)"

    # Case 2: lane-aligned channels (no fold path).
    B2, T2, C2 = 4, 24, 128
    x2 = jax.random.normal(jax.random.PRNGKey(0), (B2, T2, C2), dtype=jnp.float32)
    out2 = jax.block_until_ready(global_avg_pool_1d(x2))
    ref2 = jnp.mean(x2, axis=1)
    assert out2.shape == (B2, C2), out2.shape
    assert jnp.allclose(out2, ref2, atol=1e-5, rtol=1e-5), "mismatch vs reference (case 2)"

    print("KERNEL_OK")
</pallas_src>

<mosaic_0001>
module attributes {stable_mosaic.version = 11 : i64} {
  func.func @kernel(%arg0: i32, %arg1: i32, %arg2: i32, %arg3: memref<2x4x128xf32, #tpu.memory_space<vmem>>, %arg4: memref<1x2x128xf32, #tpu.memory_space<vmem>>) attributes {dimension_semantics = [#tpu.dimension_semantics<parallel>, #tpu.dimension_semantics<parallel>, #tpu.dimension_semantics<arbitrary>], iteration_bounds = array<i64: 1, 1, 1>, scalar_prefetch = 0 : i64, scratch_operands = 0 : i64, tpu.core_type = #tpu.core_type<tc>, window_params = [{transform_indices = @transform_0, window_bounds = array<i64: 2, 4, 128>}, {transform_indices = @transform_1, window_bounds = array<i64: 1, 2, 128>}]} {
    %c0_i32 = arith.constant 0 : i32
    %0 = arith.cmpi eq, %arg2, %c0_i32 : i32
    %1 = arith.extui %0 : i1 to i32
    %c0_i32_0 = arith.constant 0 : i32
    %2 = arith.cmpi ne, %1, %c0_i32_0 : i32
    scf.if %2 {
      %cst_9 = arith.constant 0.000000e+00 : f32
      %11 = vector.broadcast %cst_9 : f32 to vector<2x128xf32>
      %c0_10 = arith.constant 0 : index
      %c0_11 = arith.constant 0 : index
      %c0_12 = arith.constant 0 : index
      %12 = vector.load %arg4[%c0_10, %c0_11, %c0_12] : memref<1x2x128xf32, #tpu.memory_space<vmem>>, vector<1x2x128xf32>
      %13 = vector.shape_cast %12 : vector<1x2x128xf32> to vector<2x128xf32>
      %14 = vector.shape_cast %11 : vector<2x128xf32> to vector<1x2x128xf32>
      tpu.vector_store %arg4[%c0_10, %c0_11, %c0_12], %14 {strides = array<i32>} : memref<1x2x128xf32, #tpu.memory_space<vmem>>, vector<1x2x128xf32>,
    } else {
    }
    %c0 = arith.constant 0 : index
    %c0_1 = arith.constant 0 : index
    %c0_2 = arith.constant 0 : index
    %3 = vector.load %arg3[%c0, %c0_1, %c0_2] : memref<2x4x128xf32, #tpu.memory_space<vmem>>, vector<2x4x128xf32>
    %c0_3 = arith.constant 0 : index
    %c0_4 = arith.constant 0 : index
    %c0_5 = arith.constant 0 : index
    %4 = vector.load %arg4[%c0_3, %c0_4, %c0_5] : memref<1x2x128xf32, #tpu.memory_space<vmem>>, vector<1x2x128xf32>
    %5 = vector.shape_cast %4 : vector<1x2x128xf32> to vector<2x128xf32>
    %cst = arith.constant dense<0.000000e+00> : vector<2x128xf32>
    %6 = vector.multi_reduction <add>, %3, %cst [1] : vector<2x4x128xf32> to vector<2x128xf32>
    %7 = arith.addf %5, %6 : vector<2x128xf32>
    %c0_6 = arith.constant 0 : index
    %c0_7 = arith.constant 0 : index
    %c0_8 = arith.constant 0 : index
    %8 = vector.load %arg4[%c0_6, %c0_7, %c0_8] : memref<1x2x128xf32, #tpu.memory_space<vmem>>, vector<1x2x128xf32>
    %9 = vector.shape_cast %8 : vector<1x2x128xf32> to vector<2x128xf32>
    %10 = vector.shape_cast %7 : vector<2x128xf32> to vector<1x2x128xf32>
    tpu.vector_store %arg4[%c0_6, %c0_7, %c0_8], %10 {strides = array<i32>} : memref<1x2x128xf32, #tpu.memory_space<vmem>>, vector<1x2x128xf32>,
    return
  }
  func.func @transform_0(%arg0: i32, %arg1: i32, %arg2: i32) -> (i32, i32, i32) {
    %c1_i32 = arith.constant 1 : i32
    %0 = arith.muli %arg0, %c1_i32 : i32
    %1 = arith.addi %0, %arg2 : i32
    %c0_i32 = arith.constant 0 : i32
    %c0_i32_0 = arith.constant 0 : i32
    return %arg1, %1, %c0_i32 : i32, i32, i32
  }
  func.func @transform_1(%arg0: i32, %arg1: i32, %arg2: i32) -> (i32, i32, i32) {
    %c0_i32 = arith.constant 0 : i32
    %c0_i32_0 = arith.constant 0 : i32
    return %arg0, %arg1, %c0_i32 : i32, i32, i32
  }
}

</mosaic_0001>

<llo_original>
// kernel: tpu_custom_call.1
$region0: #{tpu_custom_call.1}
  #allocation0 [shape = 'u32[]', space=smem, size = 0x4, offset = 0x4, fixed_abs, tag = 'smem constant byte address 0x4 - core index']
  #allocation1 [shape = 'u32[144,128]{1,0:T(1,128)}', space=vmem, size = 0x12000, scoped, tag = 'internal scratch']
  %s0 = inlined_call_operand.hbm [shape: f32[2,4,128], index: 0, kind: input, shape index: {}]
  %s1 = inlined_call_operand.hbm [shape: f32[1,2,128], index: 1, kind: output, shape index: {}]
  %s2 = sld [smem:[#allocation0]]
  $region22: #{tpu_custom_call.1} parent=0
    _
  %s4 = ssub.s32 1, %s2
  %s5 = scalar_select 0, %s4, %s2
  $region1: #{tpu_custom_call.1} parent=0
    #allocation2 [shape = 'u8[4096]{0}', space=vmem, size = 0x1000, scoped, tag = 'input window, operand 0, single buffered']
    #allocation3 [shape = 's32[1]{0}', space=sflag, size = 0x4, scoped, tag = 'scoped memory for tpu_custom_call.1']
    #allocation4 [shape = 's32[1]{0}', space=sflag, size = 0x4, scoped, tag = 'scoped memory for tpu_custom_call.1']
    #allocation5 [shape = 'u8[1024]{0}', space=vmem, size = 0x400, scoped, tag = 'output window, operand 0, single buffered']
    %6 = vsyncpa [#allocation3], 0
    %7 = vsyncpa [#allocation4], 0
    // Predicated region
    $region2: #{tpu_custom_call.1} parent=1 // pred_check
      _
    $region3: #{tpu_custom_call.1} parent=1 // pred_check_branch
      %9 = sbr.rel (0) target = $region5
    $region4: #{tpu_custom_call.1} parent=1 // pred_region
      %s10 = sadd.s32 0, 0
      %s12 = ssub.s32 128, 128
      %13 = vsyncadd [#allocation3], %s12
      %s14 = smul.addr %s10, 64
      %s15 = scalar_lea.hbm %s0, %s14
      %s16 = sshll.u32 [#allocation2], 4
      %s17 = int_to_ptr.vmem [resolvable:$true] %s16
      %22 = dma.hbm_to_vmem [thread:$0]  %s15, 128, %s17, [#allocation3], 64, 64, 4
    $region5: #{tpu_custom_call.1} parent=1 // pred_fallthru
      _
    // Predicated region
    $region6: #{tpu_custom_call.1} parent=1 // pred_check
      _
    $region7: #{tpu_custom_call.1} parent=1 // pred_check_branch
      %24 = sbr.rel (0) target = $region9
    $region8: #{tpu_custom_call.1} parent=1 // pred_region
      %25 = dma.done [#allocation3], 128
    $region9: #{tpu_custom_call.1} parent=1 // pred_fallthru
      _
    %s26 = sadd.s32 0, 0
    %p27 = scmp.eq.s32.totalorder 0, 0
    // Predicated region
    $region10: #{tpu_custom_call.1} parent=1 // pred_check
      %p28 = pneg %p27
    $region11: #{tpu_custom_call.1} parent=1 // pred_check_branch
      %30 = sbr.rel (%p28) target = $region13
    $region12: #{tpu_custom_call.1} parent=1 // pred_region
      %31 = vst [vmem:[#allocation5] sm:$0x3] 0.0
    $region13: #{tpu_custom_call.1} parent=1 // pred_fallthru
      _
    %v32 = vld [vmem:[#allocation2] sm:$0xf]
    %v33 = vld [vmem:[#allocation2 + $0x4] sm:$0xf]
    %v34 = vld [vmem:[#allocation5] sm:$0x3]
    %vm35 = vcmask 1043456
    %v36 = vsel %vm35, %v32, 0.0
    %v37 = vrot.slane %v36, 4
    %v38 = vadd.f32 %v36, %v37
    %v39 = vrot.slane %v38, 2
    %v40 = vadd.f32 %v38, %v39
    %v41 = vrot.slane %v40, 1
    %v42 = vadd.f32 %v40, %v41
    %v43 = vsel %vm35, %v33, 0.0
    %v44 = vrot.slane %v43, 4
    %v45 = vadd.f32 %v43, %v44
    %v46 = vrot.slane %v45, 2
    %v47 = vadd.f32 %v45, %v46
    %v48 = vrot.slane %v47, 1
    %v49 = vadd.f32 %v47, %v48
    %vm52 = vcmask 1041409
    %v53 = vsel %vm52, %v49, %v42
    %v55 = vadd.f32 %v34, %v53
    %56 = vst [vmem:[#allocation5] sm:$0x3] %v55
    // Predicated region
    $region14: #{tpu_custom_call.1} parent=1 // pred_check
      _
    $region15: #{tpu_custom_call.1} parent=1 // pred_check_branch
      %58 = sbr.rel (0) target = $region17
    $region16: #{tpu_custom_call.1} parent=1 // pred_region
      %s60 = ssub.s32 32, 32
      %61 = vsyncadd [#allocation4], %s60
      %s63 = sshll.u32 [#allocation5], 4
      %s64 = int_to_ptr.vmem [resolvable:$true] %s63
      %66 = dma.vmem_to_hbm [thread:$0]  %s64, 32, %s1, [#allocation4]
    $region17: #{tpu_custom_call.1} parent=1 // pred_fallthru
      _
    // Predicated region
    $region18: #{tpu_custom_call.1} parent=1 // pred_check
      _
    $region19: #{tpu_custom_call.1} parent=1 // pred_check_branch
      %68 = sbr.rel (0) target = $region21
    $region20: #{tpu_custom_call.1} parent=1 // pred_region
      %69 = dma.done [#allocation4], 32
    $region21: #{tpu_custom_call.1} parent=1 // pred_fallthru
      _
    %70 = vsyncpa [#allocation3], 1
    %71 = vsyncpa [#allocation4], 1

</llo_original>
